<compile_context>
chip_gen: v6e
topology: v6e:2x2x1
jax: 0.10.0
libtpu: 0.0.40
codegen_flags: <defaults>
</compile_context>

<pallas_src>
import jax
import jax.numpy as jnp
from jax import lax
from jax.experimental import pallas as pl
from jax.experimental.pallas import tpu as pltpu


CIN, COUT = 2064, 86
K_PAD = 2176      # 2064 rounded up to a multiple of 128 (lane dim of the contraction)
COUT_PAD = 96     # 86 rounded up to a multiple of 16 (bf16 sublane pack); weight slab 96x2176


def _conv1x1_kernel(x_ref, w_ref, b_ref, o_ref, xpad_ref):
    # x_ref:    (M, CIN)          f32  activation straight from HBM (cast in-kernel)
    # w_ref:    (COUT_PAD, K_PAD) bf16 pre-packed, zero-padded weight (y = x . W^T)
    # b_ref:    (1, COUT_PAD)     f32
    # o_ref:    (M, COUT_PAD)     f32
    # xpad_ref: (M, K_PAD)        bf16 VMEM scratch holding the zero-padded bf16 activation
    xpad_ref[...] = jnp.zeros_like(xpad_ref)                 # guarantee zero contraction pad
    xpad_ref[:, :CIN] = x_ref[...].astype(jnp.bfloat16)      # fold f32->bf16 cast into kernel

    # Contract the last (lane) dim of both operands: (M, K_PAD) . (COUT_PAD, K_PAD)^T
    acc = lax.dot_general(
        xpad_ref[...], w_ref[...],
        dimension_numbers=(((1,), (1,)), ((), ())),
        preferred_element_type=jnp.float32,                  # f32 accumulation on the MXU
    )
    o_ref[...] = acc + b_ref[...]


def prepare_conv_params(weight_oihw, bias):
    """One-time (init-time) weight/bias repack into lane-aligned slabs.

    weight_oihw: (Cout, Cin, 1, 1) f32
    bias:        (Cout,)           f32
    returns (w_packed (COUT_PAD, K_PAD) bf16, b_packed (1, COUT_PAD) f32)
    """
    cout, cin = weight_oihw.shape[0], weight_oihw.shape[1]
    w2d = weight_oihw.reshape(cout, cin).astype(jnp.bfloat16)              # (Cout, Cin)
    w_packed = jnp.zeros((COUT_PAD, K_PAD), jnp.bfloat16).at[:cout, :cin].set(w2d)
    b_packed = jnp.zeros((1, COUT_PAD), jnp.float32).at[0, :cout].set(bias.astype(jnp.float32))
    return w_packed, b_packed


def conv2d_1x1(x_nchw, w_packed, b_packed):
    """1x1 stride-1 Conv2d via one Pallas GEMV kernel (pre-packed weights).

    x_nchw: (N, Cin, H, W) f32  ->  (N, Cout, H, W) f32
    Call this under jax.jit so the NCHW<->matrix glue fuses around the pallas_call.
    """
    n, cin, h, w = x_nchw.shape
    m = n * h * w

    # NCHW -> (M, Cin), stays f32; the bf16 cast and K padding happen inside the kernel.
    x2d = jnp.transpose(x_nchw, (0, 2, 3, 1)).reshape(m, cin)

    cost = pl.CostEstimate(
        flops=2 * m * K_PAD * COUT_PAD,
        transcendentals=0,
        bytes_accessed=m * cin * 4 + COUT_PAD * K_PAD * 2 + COUT_PAD * 4 + m * COUT_PAD * 4,
    )

    out_p = pl.pallas_call(
        _conv1x1_kernel,
        out_shape=jax.ShapeDtypeStruct((m, COUT_PAD), jnp.float32),
        # Whole problem is <1 MiB of VMEM: single full-array block, no grid (tiling would
        # only add ~0.35 us/step overhead on a latency-dominated call).
        in_specs=[
            pl.BlockSpec((m, cin), lambda: (0, 0)),
            pl.BlockSpec((COUT_PAD, K_PAD), lambda: (0, 0)),
            pl.BlockSpec((1, COUT_PAD), lambda: (0, 0)),
        ],
        out_specs=pl.BlockSpec((m, COUT_PAD), lambda: (0, 0)),
        scratch_shapes=[pltpu.VMEM((m, K_PAD), jnp.bfloat16)],
        cost_estimate=cost,
    )(x2d, w_packed, b_packed)

    # Epilogue (drop Cout padding, restore NCHW) stays inside the same jit -> fused.
    out2d = out_p[:, :COUT]
    return out2d.reshape(n, h, w, COUT).transpose(0, 3, 1, 2)


if __name__ == "__main__":
    key = jax.random.PRNGKey(0)
    k_x, k_w, k_b = jax.random.split(key, 3)

    # Input matching the module: torch.Size([1, 2064, 1, 1])
    x = jax.random.normal(k_x, (1, CIN, 1, 1), dtype=jnp.float32)

    # Deterministic param init (PyTorch Conv2d default: U(-1/sqrt(fan_in), 1/sqrt(fan_in)))
    fan_in = CIN * 1 * 1
    bound = 1.0 / (fan_in ** 0.5)
    weight = jax.random.uniform(k_w, (COUT, CIN, 1, 1), jnp.float32, -bound, bound)
    bias = jax.random.uniform(k_b, (COUT,), jnp.float32, -bound, bound)

    # One-time weight repack (lives at parameter-init time in a real model).
    w_packed, b_packed = prepare_conv_params(weight, bias)

    # Jit the whole wrapper so pre/post glue fuses with the pallas_call.
    conv_fn = jax.jit(conv2d_1x1)
    out = conv_fn(x, w_packed, b_packed)
    jax.block_until_ready(out)
    assert out.shape == (1, COUT, 1, 1)

    # Reference 1: same bf16-input / f32-accumulate math as the MXU path (tight check).
    x2d_bf = x.reshape(1, CIN).astype(jnp.bfloat16).astype(jnp.float32)
    w2d_bf = weight.reshape(COUT, CIN).astype(jnp.bfloat16).astype(jnp.float32)
    ref_bf = (x2d_bf @ w2d_bf.T + bias).reshape(1, COUT, 1, 1)
    assert jnp.allclose(out, ref_bf, atol=1e-3, rtol=1e-3)

    # Reference 2: full-f32 conv (loose check covering the bf16 weight/activation cast).
    ref_f32 = (x.reshape(1, CIN) @ weight.reshape(COUT, CIN).T + bias).reshape(1, COUT, 1, 1)
    assert jnp.allclose(out, ref_f32, atol=5e-2, rtol=5e-2)

    print("KERNEL_OK")
</pallas_src>

<mosaic_0001>
module attributes {stable_mosaic.version = 11 : i64} {
  func.func @_conv1x1_kernel(%arg0: memref<1x2064xf32, #tpu.memory_space<vmem>>, %arg1: memref<96x2176xbf16, #tpu.memory_space<vmem>>, %arg2: memref<1x96xf32, #tpu.memory_space<vmem>>, %arg3: memref<1x96xf32, #tpu.memory_space<vmem>>, %arg4: memref<1x2176xbf16, #tpu.memory_space<vmem>>) attributes {dimension_semantics = [], scalar_prefetch = 0 : i64, scratch_operands = 1 : i64, tpu.core_type = #tpu.core_type<tc>} {
    %cst = arith.constant 0.000000e+00 : bf16
    %0 = vector.broadcast %cst : bf16 to vector<1x2176xbf16>
    %c0 = arith.constant 0 : index
    %c0_0 = arith.constant 0 : index
    %1 = vector.load %arg4[%c0, %c0_0] : memref<1x2176xbf16, #tpu.memory_space<vmem>>, vector<1x2176xbf16>
    tpu.vector_store %arg4[%c0, %c0_0], %0 {strides = array<i32>} : memref<1x2176xbf16, #tpu.memory_space<vmem>>, vector<1x2176xbf16>,
    %c0_1 = arith.constant 0 : index
    %c0_2 = arith.constant 0 : index
    %2 = vector.load %arg0[%c0_1, %c0_2] : memref<1x2064xf32, #tpu.memory_space<vmem>>, vector<1x2064xf32>
    %3 = arith.truncf %2 : vector<1x2064xf32> to vector<1x2064xbf16>
    %c0_3 = arith.constant 0 : index
    %c0_4 = arith.constant 0 : index
    %4 = vector.load %arg4[%c0_3, %c0_4] : memref<1x2176xbf16, #tpu.memory_space<vmem>>, vector<1x2064xbf16>
    tpu.vector_store %arg4[%c0_3, %c0_4], %3 {strides = array<i32>} : memref<1x2176xbf16, #tpu.memory_space<vmem>>, vector<1x2064xbf16>,
    %c0_5 = arith.constant 0 : index
    %c0_6 = arith.constant 0 : index
    %5 = vector.load %arg4[%c0_5, %c0_6] : memref<1x2176xbf16, #tpu.memory_space<vmem>>, vector<1x2176xbf16>
    %c0_7 = arith.constant 0 : index
    %c0_8 = arith.constant 0 : index
    %6 = vector.load %arg1[%c0_7, %c0_8] : memref<96x2176xbf16, #tpu.memory_space<vmem>>, vector<96x2176xbf16>
    %cst_9 = arith.constant dense<0.000000e+00> : vector<1x96xf32>
    %7 = tpu.matmul %5, %6, %cst_9 {dimension_numbers = #tpu.dot_dimension_numbers<[1], [1], [0], [0], [0, 0, 1, 0], [], []>} : vector<1x2176xbf16>, vector<96x2176xbf16>, vector<1x96xf32> -> vector<1x96xf32>
    %c0_10 = arith.constant 0 : index
    %c0_11 = arith.constant 0 : index
    %8 = vector.load %arg2[%c0_10, %c0_11] : memref<1x96xf32, #tpu.memory_space<vmem>>, vector<1x96xf32>
    %9 = arith.addf %7, %8 : vector<1x96xf32>
    %c0_12 = arith.constant 0 : index
    %c0_13 = arith.constant 0 : index
    %10 = vector.load %arg3[%c0_12, %c0_13] : memref<1x96xf32, #tpu.memory_space<vmem>>, vector<1x96xf32>
    tpu.vector_store %arg3[%c0_12, %c0_13], %9 {strides = array<i32>} : memref<1x96xf32, #tpu.memory_space<vmem>>, vector<1x96xf32>,
    return
  }
}

</mosaic_0001>

<llo_original>
// kernel: conv2d_1x1.1
$region0: #{conv2d_1x1.1}
  #allocation0 [shape = 'u32[]', space=smem, size = 0x4, offset = 0x4, fixed_abs, tag = 'smem constant byte address 0x4 - core index']
  #allocation1 [shape = 'u32[144,128]{1,0:T(1,128)}', space=vmem, size = 0x12000, scoped, tag = 'internal scratch']
  #allocation2 [shape = 'bf16[1,2176]{1,0:T(2,128)(2,1)}', space=vmem, size = 0x2200, scoped, tag = 'scratch operand']
  %s0 = inlined_call_operand.hbm [shape: f32[1,2064], index: 0, kind: input, shape index: {}]
  %s1 = inlined_call_operand.hbm [shape: bf16[96,2176], index: 1, kind: input, shape index: {}]
  %s2 = inlined_call_operand.vmem [shape: f32[1,96], index: 2, kind: input, shape index: {}]
  %s3 = inlined_call_operand.vmem [shape: f32[1,96], index: 3, kind: output, shape index: {}]
  %s4 = sld [smem:[#allocation0]]
  $region30: #{conv2d_1x1.1} parent=0
    _
  %s6 = ssub.s32 1, %s4
  %s7 = scalar_select 0, %s6, %s4
  $region1: #{conv2d_1x1.1} parent=0
    #allocation3 [shape = 'u8[8704]{0}', space=vmem, size = 0x2400, scoped, tag = 'input window, operand 0, single buffered']
    #allocation4 [shape = 's32[1]{0}', space=sflag, size = 0x4, scoped, tag = 'scoped memory for conv2d_1x1.1']
    #allocation5 [shape = 'u8[417792]{0}', space=vmem, size = 0x66000, scoped, tag = 'input window, operand 1, single buffered']
    #allocation6 [shape = 's32[1]{0}', space=sflag, size = 0x4, scoped, tag = 'scoped memory for conv2d_1x1.1']
    %8 = vsyncpa [#allocation4], 0
    %9 = vsyncpa [#allocation6], 0
    // Predicated region
    $region2: #{conv2d_1x1.1} parent=1 // pred_check
      _
    $region3: #{conv2d_1x1.1} parent=1 // pred_check_branch
      %11 = sbr.rel (0) target = $region5
    $region4: #{conv2d_1x1.1} parent=1 // pred_region
      %s13 = ssub.s32 272, 272
      %14 = vsyncadd [#allocation4], %s13
      %s16 = sshll.u32 [#allocation3], 4
      %s17 = int_to_ptr.vmem [resolvable:$true] %s16
      %19 = dma.hbm_to_vmem [thread:$0]  %s0, 272, %s17, [#allocation4]
    $region5: #{conv2d_1x1.1} parent=1 // pred_fallthru
      _
    // Predicated region
    $region6: #{conv2d_1x1.1} parent=1 // pred_check
      _
    $region7: #{conv2d_1x1.1} parent=1 // pred_check_branch
      %21 = sbr.rel (0) target = $region9
    $region8: #{conv2d_1x1.1} parent=1 // pred_region
      %s23 = ssub.s32 13056, 13056
      %24 = vsyncadd [#allocation6], %s23
      %s25 = sshll.u32 [#allocation5], 4
      %s26 = int_to_ptr.vmem [resolvable:$true] %s25
      %31 = dma.hbm_to_vmem [thread:$0]  %s1, 13056, %s26, [#allocation6], 1088, 1088, 68
    $region9: #{conv2d_1x1.1} parent=1 // pred_fallthru
      _
    // Predicated region
    $region10: #{conv2d_1x1.1} parent=1 // pred_check
      _
    $region11: #{conv2d_1x1.1} parent=1 // pred_check_branch
      %33 = sbr.rel (0) target = $region13
    $region12: #{conv2d_1x1.1} parent=1 // pred_region
      _
    $region13: #{conv2d_1x1.1} parent=1 // pred_fallthru
      _
    // Predicated region
    $region14: #{conv2d_1x1.1} parent=1 // pred_check
      _
    $region15: #{conv2d_1x1.1} parent=1 // pred_check_branch
      %35 = sbr.rel (0) target = $region17
    $region16: #{conv2d_1x1.1} parent=1 // pred_region
      %36 = dma.done [#allocation4], 272
    $region17: #{conv2d_1x1.1} parent=1 // pred_fallthru
      _
    // Predicated region
    $region18: #{conv2d_1x1.1} parent=1 // pred_check
      _
    $region19: #{conv2d_1x1.1} parent=1 // pred_check_branch
      %38 = sbr.rel (0) target = $region21
    $region20: #{conv2d_1x1.1} parent=1 // pred_region
      %39 = dma.done [#allocation6], 13056
    $region21: #{conv2d_1x1.1} parent=1 // pred_fallthru
      _
    %vm41 = vcmask 1040384
    %vm42 = vsmask.f32 256
    %vm43 = vmand %vm41, %vm42
    %vm44 = vcmask 1041409
    %vm45 = vsmask.f32 1280
    %vm46 = vmand %vm44, %vm45
    %vm47 = vmor %vm46, %vm43
    %vm48 = vcmask 1042434
    %vm49 = vsmask.f32 2304
    %vm50 = vmand %vm48, %vm49
    %vm51 = vmor %vm50, %vm47
    %vm52 = vcmask 1043459
    %vm53 = vsmask.f32 3328
    %vm54 = vmand %vm52, %vm53
    %vm55 = vmor %vm54, %vm51
    %vm56 = vcmask 1044484
    %vm57 = vsmask.f32 4352
    %vm58 = vmand %vm56, %vm57
    %vm59 = vmor %vm58, %vm55
    %vm60 = vcmask 1045509
    %vm61 = vsmask.f32 5376
    %vm62 = vmand %vm60, %vm61
    %vm63 = vmor %vm62, %vm59
    %vm64 = vcmask 1046534
    %vm65 = vsmask.f32 6400
    %vm66 = vmand %vm64, %vm65
    %vm67 = vmor %vm66, %vm63
    %vm68 = vcmask 1047559
    %vm69 = vsmask.f32 7424
    %vm70 = vmand %vm68, %vm69
    %vm71 = vmor %vm70, %vm67
    %v72 = vld [vmem:[#allocation2] sm:$0xff]
    %v73 = vsel %vm71, 0, %v72
    %74 = vst [vmem:[#allocation2] sm:$0xff] %v73
    %v75 = vld [vmem:[#allocation2 + $0x8] sm:$0xff]
    %v76 = vsel %vm71, 0, %v75
    %77 = vst [vmem:[#allocation2 + $0x8] sm:$0xff] %v76
    %v78 = vld [vmem:[#allocation2 + $0x10] sm:$0x1]
    %v79 = vsel %vm43, 0, %v78
    %80 = vst [vmem:[#allocation2 + $0x10] sm:$0x1] %v79
    %v81 = vld [vmem:[#allocation3] sm:$0xff]
    %v82 = vld [vmem:[#allocation3 + $0x8] sm:$0xff]
    %v83 = vld [vmem:[#allocation3 + $0x10] sm:$0x1]
    %v87 = vlaneseq
    %v88 = vshrl.u32 %v87, 7
    %v89 = vsub.s32 0, %v88
    %v90 = vrot.slane %v81, %v89
    %v91 = vlaneseq
    %v92 = vshrl.u32 %v91, 7
    %v93 = vsub.s32 1, %v92
    %v94 = vrot.slane %v81, %v93
    %v95 = vlaneseq
    %v96 = vshrl.u32 %v95, 7
    %v97 = vsub.s32 2, %v96
    %v98 = vrot.slane %v81, %v97
    %v99 = vlaneseq
    %v100 = vshrl.u32 %v99, 7
    %v101 = vsub.s32 3, %v100
    %v102 = vrot.slane %v81, %v101
    %v103 = vlaneseq
    %v104 = vshrl.u32 %v103, 7
    %v105 = vsub.s32 4, %v104
    %v106 = vrot.slane %v81, %v105
    %v107 = vlaneseq
    %v108 = vshrl.u32 %v107, 7
    %v109 = vsub.s32 5, %v108
    %v110 = vrot.slane %v81, %v109
    %v111 = vlaneseq
    %v112 = vshrl.u32 %v111, 7
    %v113 = vsub.s32 6, %v112
    %v114 = vrot.slane %v81, %v113
    %v115 = vlaneseq
    %v116 = vshrl.u32 %v115, 7
    %v117 = vsub.s32 7, %v116
    %v118 = vrot.slane %v81, %v117
    %v119 = vlaneseq
    %v120 = vshrl.u32 %v119, 7
    %v121 = vsub.s32 0, %v120
    %v122 = vrot.slane %v82, %v121
    %v123 = vlaneseq
    %v124 = vshrl.u32 %v123, 7
    %v125 = vsub.s32 1, %v124
    %v126 = vrot.slane %v82, %v125
    %v127 = vlaneseq
    %v128 = vshrl.u32 %v127, 7
    %v129 = vsub.s32 2, %v128
    %v130 = vrot.slane %v82, %v129
    %v131 = vlaneseq
    %v132 = vshrl.u32 %v131, 7
    %v133 = vsub.s32 3, %v132
    %v134 = vrot.slane %v82, %v133
    %v135 = vlaneseq
    %v136 = vshrl.u32 %v135, 7
    %v137 = vsub.s32 4, %v136
    %v138 = vrot.slane %v82, %v137
    %v139 = vlaneseq
    %v140 = vshrl.u32 %v139, 7
    %v141 = vsub.s32 5, %v140
    %v142 = vrot.slane %v82, %v141
    %v143 = vlaneseq
    %v144 = vshrl.u32 %v143, 7
    %v145 = vsub.s32 6, %v144
    %v146 = vrot.slane %v82, %v145
    %v147 = vlaneseq
    %v148 = vshrl.u32 %v147, 7
    %v149 = vsub.s32 7, %v148
    %v150 = vrot.slane %v82, %v149
    %v151 = vlaneseq
    %v152 = vshrl.u32 %v151, 7
    %v153 = vsub.s32 0, %v152
    %v154 = vrot.slane %v83, %v153
    %v172 = vpack.c.bf16 %v90, %v90
    %v173 = vpack.c.bf16 %v94, %v94
    %v174 = vpack.c.bf16 %v98, %v98
    %v175 = vpack.c.bf16 %v102, %v102
    %v176 = vpack.c.bf16 %v106, %v106
    %v177 = vpack.c.bf16 %v110, %v110
    %v178 = vpack.c.bf16 %v114, %v114
    %v179 = vpack.c.bf16 %v118, %v118
    %v180 = vpack.c.bf16 %v122, %v122
    %v181 = vpack.c.bf16 %v126, %v126
    %v182 = vpack.c.bf16 %v130, %v130
    %v183 = vpack.c.bf16 %v134, %v134
    %v184 = vpack.c.bf16 %v138, %v138
    %v185 = vpack.c.bf16 %v142, %v142
    %v186 = vpack.c.bf16 %v146, %v146
    %v187 = vpack.c.bf16 %v150, %v150
    %v188 = vpack.c.bf16 %v154, %v154
    %v206 = vcombine.low %v172, %v173
    %v207 = vcombine.low %v174, %v175
    %v208 = vcombine.low %v176, %v177
    %v209 = vcombine.low %v178, %v179
    %v211 = vunpack.c.l.s4 1966171168
    %v212 = vunpack.c.0.s8 %v211
    %v213 = vlaneseq
    %v214 = vshrl.u32 %v213, 7
    %v215 = vsub.s32 %v212, %v214
    %v216 = vrot.slane %v206, %v215
    %v218 = vunpack.c.l.s4 1966171168
    %v219 = vunpack.c.0.s8 %v218
    %v220 = vlaneseq
    %v221 = vshrl.u32 %v220, 7
    %v222 = vsub.s32 %v219, %v221
    %v223 = vrot.slane %v207, %v222
    %v225 = vunpack.c.l.s4 1966171168
    %v226 = vunpack.c.0.s8 %v225
    %v227 = vlaneseq
    %v228 = vshrl.u32 %v227, 7
    %v229 = vsub.s32 %v226, %v228
    %v230 = vrot.slane %v208, %v229
    %v232 = vunpack.c.l.s4 1966171168
    %v233 = vunpack.c.0.s8 %v232
    %v234 = vlaneseq
    %v235 = vshrl.u32 %v234, 7
    %v236 = vsub.s32 %v233, %v235
    %v237 = vrot.slane %v209, %v236
    %v238 = vcombine.low %v216, %v223
    %v239 = vcombine.low %v230, %v237
    %v241 = vunpack.c.l.s4 1966171168
    %v242 = vunpack.c.0.s8 %v241
    %v243 = vlaneseq
    %v244 = vshrl.u32 %v243, 7
    %v245 = vsub.s32 %v242, %v244
    %v246 = vrot.slane %v238, %v245
    %v248 = vunpack.c.l.s4 1966171168
    %v249 = vunpack.c.0.s8 %v248
    %v250 = vlaneseq
    %v251 = vshrl.u32 %v250, 7
    %v252 = vsub.s32 %v249, %v251
    %v253 = vrot.slane %v239, %v252
    %v254 = vcombine.low %v246, %v253
    %v255 = vcombine.low %v180, %v181
    %v256 = vcombine.low %v182, %v183
    %v257 = vcombine.low %v184, %v185
    %v258 = vcombine.low %v186, %v187
    %v260 = vunpack.c.l.s4 1966171168
    %v261 = vunpack.c.0.s8 %v260
    %v262 = vlaneseq
    %v263 = vshrl.u32 %v262, 7
    %v264 = vsub.s32 %v261, %v263
    %v265 = vrot.slane %v255, %v264
    %v267 = vunpack.c.l.s4 1966171168
    %v268 = vunpack.c.0.s8 %v267
    %v269 = vlaneseq
    %v270 = vshrl.u32 %v269, 7
    %v271 = vsub.s32 %v268, %v270
    %v272 = vrot.slane %v256, %v271
    %v274 = vunpack.c.l.s4 1966171168
    %v275 = vunpack.c.0.s8 %v274
    %v276 = vlaneseq
    %v277 = vshrl.u32 %v276, 7
    %v278 = vsub.s32 %v275, %v277
    %v279 = vrot.slane %v257, %v278
    %v281 = vunpack.c.l.s4 1966171168
    %v282 = vunpack.c.0.s8 %v281
    %v283 = vlaneseq
    %v284 = vshrl.u32 %v283, 7
    %v285 = vsub.s32 %v282, %v284
    %v286 = vrot.slane %v258, %v285
    %v287 = vcombine.low %v265, %v272
    %v288 = vcombine.low %v279, %v286
    %v290 = vunpack.c.l.s4 1966171168
    %v291 = vunpack.c.0.s8 %v290
    %v292 = vlaneseq
    %v293 = vshrl.u32 %v292, 7
    %v294 = vsub.s32 %v291, %v293
    %v295 = vrot.slane %v287, %v294
    %v297 = vunpack.c.l.s4 1966171168
    %v298 = vunpack.c.0.s8 %v297
    %v299 = vlaneseq
    %v300 = vshrl.u32 %v299, 7
    %v301 = vsub.s32 %v298, %v300
    %v302 = vrot.slane %v288, %v301
    %v303 = vcombine.low %v295, %v302
    %v305 = vunpack.c.l.s4 1966171168
    %v306 = vunpack.c.0.s8 %v305
    %v307 = vlaneseq
    %v308 = vshrl.u32 %v307, 7
    %v309 = vsub.s32 %v306, %v308
    %v310 = vrot.slane %v188, %v309
    %v312 = vunpack.c.l.s4 1966171168
    %v313 = vunpack.c.0.s8 %v312
    %v314 = vlaneseq
    %v315 = vshrl.u32 %v314, 7
    %v316 = vsub.s32 %v313, %v315
    %v317 = vrot.slane %v310, %v316
    %v321 = vld [vmem:[#allocation2] sm:$0xff]
    %v322 = vsel %vm71, %v254, %v321
    %323 = vst [vmem:[#allocation2] sm:$0xff] %v322
    %v324 = vld [vmem:[#allocation2 + $0x8] sm:$0xff]
    %v325 = vsel %vm71, %v303, %v324
    %326 = vst [vmem:[#allocation2 + $0x8] sm:$0xff] %v325
    %vm327 = vcmask 122880
    %vm328 = vmand %vm327, %vm42
    %v329 = vld [vmem:[#allocation2 + $0x10] sm:$0x1]
    %v330 = vsel %vm328, %v317, %v329
    %331 = vst [vmem:[#allocation2 + $0x10] sm:$0x1] %v330
    %v332 = vld [vmem:[#allocation2] sm:$0xff]
    %v333 = vld [vmem:[#allocation2 + $0x8] sm:$0xff]
    %v334 = vld [vmem:[#allocation2 + $0x10] sm:$0x1]
    %v335 = vld [vmem:[#allocation5] sm:$0xff]
    %v336 = vld [vmem:[#allocation5 + $0x8] sm:$0xff]
    %v337 = vld [vmem:[#allocation5 + $0x10] sm:$0xff]
    %v338 = vld [vmem:[#allocation5 + $0x18] sm:$0xff]
    %v339 = vld [vmem:[#allocation5 + $0x20] sm:$0xff]
    %v340 = vld [vmem:[#allocation5 + $0x28] sm:$0xff]
    %v341 = vld [vmem:[#allocation5 + $0x30] sm:$0xff]
    %v342 = vld [vmem:[#allocation5 + $0x38] sm:$0xff]
    %v343 = vld [vmem:[#allocation5 + $0x40] sm:$0xf]
    %v344 = vld [vmem:[#allocation5 + $0x44] sm:$0xff]
    %v345 = vld [vmem:[#allocation5 + $0x4c] sm:$0xff]
    %v346 = vld [vmem:[#allocation5 + $0x54] sm:$0xff]
    %v347 = vld [vmem:[#allocation5 + $0x5c] sm:$0xff]
    %v348 = vld [vmem:[#allocation5 + $0x64] sm:$0xff]
    %v349 = vld [vmem:[#allocation5 + $0x6c] sm:$0xff]
    %v350 = vld [vmem:[#allocation5 + $0x74] sm:$0xff]
    %v351 = vld [vmem:[#allocation5 + $0x7c] sm:$0xff]
    %v352 = vld [vmem:[#allocation5 + $0x84] sm:$0xf]
    %v353 = vld [vmem:[#allocation5 + $0x88] sm:$0xff]
    %v354 = vld [vmem:[#allocation5 + $0x90] sm:$0xff]
    %v355 = vld [vmem:[#allocation5 + $0x98] sm:$0xff]
    %v356 = vld [vmem:[#allocation5 + $0xa0] sm:$0xff]
    %v357 = vld [vmem:[#allocation5 + $0xa8] sm:$0xff]
    %v358 = vld [vmem:[#allocation5 + $0xb0] sm:$0xff]
    %v359 = vld [vmem:[#allocation5 + $0xb8] sm:$0xff]
    %v360 = vld [vmem:[#allocation5 + $0xc0] sm:$0xff]
    %v361 = vld [vmem:[#allocation5 + $0xc8] sm:$0xf]
    %v362 = vld [vmem:[#allocation5 + $0xcc] sm:$0xff]
    %v363 = vld [vmem:[#allocation5 + $0xd4] sm:$0xff]
    %v364 = vld [vmem:[#allocation5 + $0xdc] sm:$0xff]
    %v365 = vld [vmem:[#allocation5 + $0xe4] sm:$0xff]
    %v366 = vld [vmem:[#allocation5 + $0xec] sm:$0xff]
    %v367 = vld [vmem:[#allocation5 + $0xf4] sm:$0xff]
    %v368 = vld [vmem:[#allocation5 + $0xfc] sm:$0xff]
    %v369 = vld [vmem:[#allocation5 + $0x104] sm:$0xff]
    %v370 = vld [vmem:[#allocation5 + $0x10c] sm:$0xf]
    %v371 = vld [vmem:[#allocation5 + $0x110] sm:$0xff]
    %v372 = vld [vmem:[#allocation5 + $0x118] sm:$0xff]
    %v373 = vld [vmem:[#allocation5 + $0x120] sm:$0xff]
    %v374 = vld [vmem:[#allocation5 + $0x128] sm:$0xff]
    %v375 = vld [vmem:[#allocation5 + $0x130] sm:$0xff]
    %v376 = vld [vmem:[#allocation5 + $0x138] sm:$0xff]
    %v377 = vld [vmem:[#allocation5 + $0x140] sm:$0xff]
    %v378 = vld [vmem:[#allocation5 + $0x148] sm:$0xff]
    %v379 = vld [vmem:[#allocation5 + $0x150] sm:$0xf]
    %v380 = vld [vmem:[#allocation5 + $0x154] sm:$0xff]
    %v381 = vld [vmem:[#allocation5 + $0x15c] sm:$0xff]
    %v382 = vld [vmem:[#allocation5 + $0x164] sm:$0xff]
    %v383 = vld [vmem:[#allocation5 + $0x16c] sm:$0xff]
    %v384 = vld [vmem:[#allocation5 + $0x174] sm:$0xff]
    %v385 = vld [vmem:[#allocation5 + $0x17c] sm:$0xff]
    %v386 = vld [vmem:[#allocation5 + $0x184] sm:$0xff]
    %v387 = vld [vmem:[#allocation5 + $0x18c] sm:$0xff]
    %v388 = vld [vmem:[#allocation5 + $0x194] sm:$0xf]
    %v389 = vld [vmem:[#allocation5 + $0x198] sm:$0xff]
    %v390 = vld [vmem:[#allocation5 + $0x1a0] sm:$0xff]
    %v391 = vld [vmem:[#allocation5 + $0x1a8] sm:$0xff]
    %v392 = vld [vmem:[#allocation5 + $0x1b0] sm:$0xff]
    %v393 = vld [vmem:[#allocation5 + $0x1b8] sm:$0xff]
    %v394 = vld [vmem:[#allocation5 + $0x1c0] sm:$0xff]
    %v395 = vld [vmem:[#allocation5 + $0x1c8] sm:$0xff]
    %v396 = vld [vmem:[#allocation5 + $0x1d0] sm:$0xff]
    %v397 = vld [vmem:[#allocation5 + $0x1d8] sm:$0xf]
    %v398 = vld [vmem:[#allocation5 + $0x1dc] sm:$0xff]
    %v399 = vld [vmem:[#allocation5 + $0x1e4] sm:$0xff]
    %v400 = vld [vmem:[#allocation5 + $0x1ec] sm:$0xff]
    %v401 = vld [vmem:[#allocation5 + $0x1f4] sm:$0xff]
    %v402 = vld [vmem:[#allocation5 + $0x1fc] sm:$0xff]
    %v403 = vld [vmem:[#allocation5 + $0x204] sm:$0xff]
    %v404 = vld [vmem:[#allocation5 + $0x20c] sm:$0xff]
    %v405 = vld [vmem:[#allocation5 + $0x214] sm:$0xff]
    %v406 = vld [vmem:[#allocation5 + $0x21c] sm:$0xf]
    %v407 = vld [vmem:[#allocation5 + $0x220] sm:$0xff]
    %v408 = vld [vmem:[#allocation5 + $0x228] sm:$0xff]
    %v409 = vld [vmem:[#allocation5 + $0x230] sm:$0xff]
    %v410 = vld [vmem:[#allocation5 + $0x238] sm:$0xff]
    %v411 = vld [vmem:[#allocation5 + $0x240] sm:$0xff]
    %v412 = vld [vmem:[#allocation5 + $0x248] sm:$0xff]
    %v413 = vld [vmem:[#allocation5 + $0x250] sm:$0xff]
    %v414 = vld [vmem:[#allocation5 + $0x258] sm:$0xff]
    %v415 = vld [vmem:[#allocation5 + $0x260] sm:$0xf]
    %v416 = vld [vmem:[#allocation5 + $0x264] sm:$0xff]
    %v417 = vld [vmem:[#allocation5 + $0x26c] sm:$0xff]
    %v418 = vld [vmem:[#allocation5 + $0x274] sm:$0xff]
    %v419 = vld [vmem:[#allocation5 + $0x27c] sm:$0xff]
    %v420 = vld [vmem:[#allocation5 + $0x284] sm:$0xff]
    %v421 = vld [vmem:[#allocation5 + $0x28c] sm:$0xff]
    %v422 = vld [vmem:[#allocation5 + $0x294] sm:$0xff]
    %v423 = vld [vmem:[#allocation5 + $0x29c] sm:$0xff]
    %v424 = vld [vmem:[#allocation5 + $0x2a4] sm:$0xf]
    %v425 = vld [vmem:[#allocation5 + $0x2a8] sm:$0xff]
    %v426 = vld [vmem:[#allocation5 + $0x2b0] sm:$0xff]
    %v427 = vld [vmem:[#allocation5 + $0x2b8] sm:$0xff]
    %v428 = vld [vmem:[#allocation5 + $0x2c0] sm:$0xff]
    %v429 = vld [vmem:[#allocation5 + $0x2c8] sm:$0xff]
    %v430 = vld [vmem:[#allocation5 + $0x2d0] sm:$0xff]
    %v431 = vld [vmem:[#allocation5 + $0x2d8] sm:$0xff]
    %v432 = vld [vmem:[#allocation5 + $0x2e0] sm:$0xff]
    %v433 = vld [vmem:[#allocation5 + $0x2e8] sm:$0xf]
    %v434 = vld [vmem:[#allocation5 + $0x2ec] sm:$0xff]
    %v435 = vld [vmem:[#allocation5 + $0x2f4] sm:$0xff]
    %v436 = vld [vmem:[#allocation5 + $0x2fc] sm:$0xff]
    %v437 = vld [vmem:[#allocation5 + $0x304] sm:$0xff]
    %v438 = vld [vmem:[#allocation5 + $0x30c] sm:$0xff]
    %v439 = vld [vmem:[#allocation5 + $0x314] sm:$0xff]
    %v440 = vld [vmem:[#allocation5 + $0x31c] sm:$0xff]
    %v441 = vld [vmem:[#allocation5 + $0x324] sm:$0xff]
    %v442 = vld [vmem:[#allocation5 + $0x32c] sm:$0xf]
    %v443 = vld [vmem:[%s2] sm:$0x1]
    %v447 = vcombine.high %v332, %v332
    %v449 = vunpack.c.l.s4 1966171168
    %v450 = vunpack.c.0.s8 %v449
    %v451 = vlaneseq
    %v452 = vshrl.u32 %v451, 7
    %v453 = vsub.s32 %v450, %v452
    %v454 = vrot.slane %v332, %v453
    %v456 = vunpack.c.l.s4 1966171168
    %v457 = vunpack.c.0.s8 %v456
    %v458 = vlaneseq
    %v459 = vshrl.u32 %v458, 7
    %v460 = vsub.s32 %v457, %v459
    %v461 = vrot.slane %v447, %v460
    %v462 = vcombine.high %v454, %v454
    %v463 = vcombine.high %v461, %v461
    %v465 = vunpack.c.l.s4 1966171168
    %v466 = vunpack.c.0.s8 %v465
    %v467 = vlaneseq
    %v468 = vshrl.u32 %v467, 7
    %v469 = vsub.s32 %v466, %v468
    %v470 = vrot.slane %v454, %v469
    %v472 = vunpack.c.l.s4 1966171168
    %v473 = vunpack.c.0.s8 %v472
    %v474 = vlaneseq
    %v475 = vshrl.u32 %v474, 7
    %v476 = vsub.s32 %v473, %v475
    %v477 = vrot.slane %v461, %v476
    %v479 = vunpack.c.l.s4 1966171168
    %v480 = vunpack.c.0.s8 %v479
    %v481 = vlaneseq
    %v482 = vshrl.u32 %v481, 7
    %v483 = vsub.s32 %v480, %v482
    %v484 = vrot.slane %v462, %v483
    %v486 = vunpack.c.l.s4 1966171168
    %v487 = vunpack.c.0.s8 %v486
    %v488 = vlaneseq
    %v489 = vshrl.u32 %v488, 7
    %v490 = vsub.s32 %v487, %v489
    %v491 = vrot.slane %v463, %v490
    %v492 = vcombine.high %v470, %v470
    %v493 = vcombine.high %v477, %v477
    %v494 = vcombine.high %v484, %v484
    %v495 = vcombine.high %v491, %v491
    %v496 = vcombine.high %v333, %v333
    %v498 = vunpack.c.l.s4 1966171168
    %v499 = vunpack.c.0.s8 %v498
    %v500 = vlaneseq
    %v501 = vshrl.u32 %v500, 7
    %v502 = vsub.s32 %v499, %v501
    %v503 = vrot.slane %v333, %v502
    %v505 = vunpack.c.l.s4 1966171168
    %v506 = vunpack.c.0.s8 %v505
    %v507 = vlaneseq
    %v508 = vshrl.u32 %v507, 7
    %v509 = vsub.s32 %v506, %v508
    %v510 = vrot.slane %v496, %v509
    %v511 = vcombine.high %v503, %v503
    %v512 = vcombine.high %v510, %v510
    %v514 = vunpack.c.l.s4 1966171168
    %v515 = vunpack.c.0.s8 %v514
    %v516 = vlaneseq
    %v517 = vshrl.u32 %v516, 7
    %v518 = vsub.s32 %v515, %v517
    %v519 = vrot.slane %v503, %v518
    %v521 = vunpack.c.l.s4 1966171168
    %v522 = vunpack.c.0.s8 %v521
    %v523 = vlaneseq
    %v524 = vshrl.u32 %v523, 7
    %v525 = vsub.s32 %v522, %v524
    %v526 = vrot.slane %v510, %v525
    %v528 = vunpack.c.l.s4 1966171168
    %v529 = vunpack.c.0.s8 %v528
    %v530 = vlaneseq
    %v531 = vshrl.u32 %v530, 7
    %v532 = vsub.s32 %v529, %v531
    %v533 = vrot.slane %v511, %v532
    %v535 = vunpack.c.l.s4 1966171168
    %v536 = vunpack.c.0.s8 %v535
    %v537 = vlaneseq
    %v538 = vshrl.u32 %v537, 7
    %v539 = vsub.s32 %v536, %v538
    %v540 = vrot.slane %v512, %v539
    %v541 = vcombine.high %v519, %v519
    %v542 = vcombine.high %v526, %v526
    %v543 = vcombine.high %v533, %v533
    %v544 = vcombine.high %v540, %v540
    %v546 = vunpack.c.l.s4 1966171168
    %v547 = vunpack.c.0.s8 %v546
    %v548 = vlaneseq
    %v549 = vshrl.u32 %v548, 7
    %v550 = vsub.s32 %v547, %v549
    %v551 = vrot.slane %v334, %v550
    %v553 = vunpack.c.l.s4 1966171168
    %v554 = vunpack.c.0.s8 %v553
    %v555 = vlaneseq
    %v556 = vshrl.u32 %v555, 7
    %v557 = vsub.s32 %v554, %v556
    %v558 = vrot.slane %v551, %v557
    %v684 = vunpack.c.l.b16 %v335
    %v685 = vunpack.c.h.b16 %v335
    %v686 = vunpack.c.l.b16 %v336
    %v687 = vunpack.c.h.b16 %v336
    %v688 = vunpack.c.l.b16 %v337
    %v689 = vunpack.c.h.b16 %v337
    %v690 = vunpack.c.l.b16 %v338
    %v691 = vunpack.c.h.b16 %v338
    %v692 = vunpack.c.l.b16 %v339
    %v693 = vunpack.c.h.b16 %v339
    %v694 = vunpack.c.l.b16 %v340
    %v695 = vunpack.c.h.b16 %v340
    %v696 = vunpack.c.l.b16 %v341
    %v697 = vunpack.c.h.b16 %v341
    %v698 = vunpack.c.l.b16 %v342
    %v699 = vunpack.c.h.b16 %v342
    %v700 = vunpack.c.l.b16 %v343
    %v701 = vunpack.c.l.b16 %v344
    %v702 = vunpack.c.h.b16 %v344
    %v703 = vunpack.c.l.b16 %v345
    %v704 = vunpack.c.h.b16 %v345
    %v705 = vunpack.c.l.b16 %v346
    %v706 = vunpack.c.h.b16 %v346
    %v707 = vunpack.c.l.b16 %v347
    %v708 = vunpack.c.h.b16 %v347
    %v709 = vunpack.c.l.b16 %v348
    %v710 = vunpack.c.h.b16 %v348
    %v711 = vunpack.c.l.b16 %v349
    %v712 = vunpack.c.h.b16 %v349
    %v713 = vunpack.c.l.b16 %v350
    %v714 = vunpack.c.h.b16 %v350
    %v715 = vunpack.c.l.b16 %v351
    %v716 = vunpack.c.h.b16 %v351
    %v717 = vunpack.c.l.b16 %v352
    %v718 = vunpack.c.l.b16 %v353
    %v719 = vunpack.c.h.b16 %v353
    %v720 = vunpack.c.l.b16 %v354
    %v721 = vunpack.c.h.b16 %v354
    %v722 = vunpack.c.l.b16 %v355
    %v723 = vunpack.c.h.b16 %v355
    %v724 = vunpack.c.l.b16 %v356
    %v725 = vunpack.c.h.b16 %v356
    %v726 = vunpack.c.l.b16 %v357
    %v727 = vunpack.c.h.b16 %v357
    %v728 = vunpack.c.l.b16 %v358
    %v729 = vunpack.c.h.b16 %v358
    %v730 = vunpack.c.l.b16 %v359
    %v731 = vunpack.c.h.b16 %v359
    %v732 = vunpack.c.l.b16 %v360
    %v733 = vunpack.c.h.b16 %v360
    %v734 = vunpack.c.l.b16 %v361
    %v735 = vunpack.c.l.b16 %v362
    %v736 = vunpack.c.h.b16 %v362
    %v737 = vunpack.c.l.b16 %v363
    %v738 = vunpack.c.h.b16 %v363
    %v739 = vunpack.c.l.b16 %v364
    %v740 = vunpack.c.h.b16 %v364
    %v741 = vunpack.c.l.b16 %v365
    %v742 = vunpack.c.h.b16 %v365
    %v743 = vunpack.c.l.b16 %v366
    %v744 = vunpack.c.h.b16 %v366
    %v745 = vunpack.c.l.b16 %v367
    %v746 = vunpack.c.h.b16 %v367
    %v747 = vunpack.c.l.b16 %v368
    %v748 = vunpack.c.h.b16 %v368
    %v749 = vunpack.c.l.b16 %v369
    %v750 = vunpack.c.h.b16 %v369
    %v751 = vunpack.c.l.b16 %v370
    %v752 = vunpack.c.l.b16 %v371
    %v753 = vunpack.c.h.b16 %v371
    %v754 = vunpack.c.l.b16 %v372
    %v755 = vunpack.c.h.b16 %v372
    %v756 = vunpack.c.l.b16 %v373
    %v757 = vunpack.c.h.b16 %v373
    %v758 = vunpack.c.l.b16 %v374
    %v759 = vunpack.c.h.b16 %v374
    %v760 = vunpack.c.l.b16 %v375
    %v761 = vunpack.c.h.b16 %v375
    %v762 = vunpack.c.l.b16 %v376
    %v763 = vunpack.c.h.b16 %v376
    %v764 = vunpack.c.l.b16 %v377
    %v765 = vunpack.c.h.b16 %v377
    %v766 = vunpack.c.l.b16 %v378
    %v767 = vunpack.c.h.b16 %v378
    %v768 = vunpack.c.l.b16 %v379
    %v769 = vunpack.c.l.b16 %v380
    %v770 = vunpack.c.h.b16 %v380
    %v771 = vunpack.c.l.b16 %v381
    %v772 = vunpack.c.h.b16 %v381
    %v773 = vunpack.c.l.b16 %v382
    %v774 = vunpack.c.h.b16 %v382
    %v775 = vunpack.c.l.b16 %v383
    %v776 = vunpack.c.h.b16 %v383
    %v777 = vunpack.c.l.b16 %v384
    %v778 = vunpack.c.h.b16 %v384
    %v779 = vunpack.c.l.b16 %v385
    %v780 = vunpack.c.h.b16 %v385
    %v781 = vunpack.c.l.b16 %v386
    %v782 = vunpack.c.h.b16 %v386
    %v783 = vunpack.c.l.b16 %v387
    %v784 = vunpack.c.h.b16 %v387
    %v785 = vunpack.c.l.b16 %v388
    %v786 = vunpack.c.l.b16 %v389
    %v787 = vunpack.c.h.b16 %v389
    %v788 = vunpack.c.l.b16 %v390
    %v789 = vunpack.c.h.b16 %v390
    %v790 = vunpack.c.l.b16 %v391
    %v791 = vunpack.c.h.b16 %v391
    %v792 = vunpack.c.l.b16 %v392
    %v793 = vunpack.c.h.b16 %v392
    %v794 = vunpack.c.l.b16 %v393
    %v795 = vunpack.c.h.b16 %v393
    %v796 = vunpack.c.l.b16 %v394
    %v797 = vunpack.c.h.b16 %v394
    %v798 = vunpack.c.l.b16 %v395
    %v799 = vunpack.c.h.b16 %v395
    %v800 = vunpack.c.l.b16 %v396
    %v801 = vunpack.c.h.b16 %v396
    %v802 = vunpack.c.l.b16 %v397
    %v803 = vunpack.c.l.b16 %v398
    %v804 = vunpack.c.h.b16 %v398
    %v805 = vunpack.c.l.b16 %v399
    %v806 = vunpack.c.h.b16 %v399
    %v807 = vunpack.c.l.b16 %v400
    %v808 = vunpack.c.h.b16 %v400
    %v809 = vunpack.c.l.b16 %v401
    %v810 = vunpack.c.h.b16 %v401
    %v811 = vunpack.c.l.b16 %v402
    %v812 = vunpack.c.h.b16 %v402
    %v813 = vunpack.c.l.b16 %v403
    %v814 = vunpack.c.h.b16 %v403
    %v815 = vunpack.c.l.b16 %v404
    %v816 = vunpack.c.h.b16 %v404
    %v817 = vunpack.c.l.b16 %v405
    %v818 = vunpack.c.h.b16 %v405
    %v819 = vunpack.c.l.b16 %v406
    %v820 = vunpack.c.l.b16 %v407
    %v821 = vunpack.c.h.b16 %v407
    %v822 = vunpack.c.l.b16 %v408
    %v823 = vunpack.c.h.b16 %v408
    %v824 = vunpack.c.l.b16 %v409
    %v825 = vunpack.c.h.b16 %v409
    %v826 = vunpack.c.l.b16 %v410
    %v827 = vunpack.c.h.b16 %v410
    %v828 = vunpack.c.l.b16 %v411
    %v829 = vunpack.c.h.b16 %v411
    %v830 = vunpack.c.l.b16 %v412
    %v831 = vunpack.c.h.b16 %v412
    %v832 = vunpack.c.l.b16 %v413
    %v833 = vunpack.c.h.b16 %v413
    %v834 = vunpack.c.l.b16 %v414
    %v835 = vunpack.c.h.b16 %v414
    %v836 = vunpack.c.l.b16 %v415
    %v837 = vunpack.c.l.b16 %v416
    %v838 = vunpack.c.h.b16 %v416
    %v839 = vunpack.c.l.b16 %v417
    %v840 = vunpack.c.h.b16 %v417
    %v841 = vunpack.c.l.b16 %v418
    %v842 = vunpack.c.h.b16 %v418
    %v843 = vunpack.c.l.b16 %v419
    %v844 = vunpack.c.h.b16 %v419
    %v845 = vunpack.c.l.b16 %v420
    %v846 = vunpack.c.h.b16 %v420
    %v847 = vunpack.c.l.b16 %v421
    %v848 = vunpack.c.h.b16 %v421
    %v849 = vunpack.c.l.b16 %v422
    %v850 = vunpack.c.h.b16 %v422
    %v851 = vunpack.c.l.b16 %v423
    %v852 = vunpack.c.h.b16 %v423
    %v853 = vunpack.c.l.b16 %v424
    %v854 = vunpack.c.l.b16 %v425
    %v855 = vunpack.c.h.b16 %v425
    %v856 = vunpack.c.l.b16 %v426
    %v857 = vunpack.c.h.b16 %v426
    %v858 = vunpack.c.l.b16 %v427
    %v859 = vunpack.c.h.b16 %v427
    %v860 = vunpack.c.l.b16 %v428
    %v861 = vunpack.c.h.b16 %v428
    %v862 = vunpack.c.l.b16 %v429
    %v863 = vunpack.c.h.b16 %v429
    %v864 = vunpack.c.l.b16 %v430
    %v865 = vunpack.c.h.b16 %v430
    %v866 = vunpack.c.l.b16 %v431
    %v867 = vunpack.c.h.b16 %v431
    %v868 = vunpack.c.l.b16 %v432
    %v869 = vunpack.c.h.b16 %v432
    %v870 = vunpack.c.l.b16 %v433
    %v871 = vunpack.c.l.b16 %v434
    %v872 = vunpack.c.h.b16 %v434
    %v873 = vunpack.c.l.b16 %v435
    %v874 = vunpack.c.h.b16 %v435
    %v875 = vunpack.c.l.b16 %v436
    %v876 = vunpack.c.h.b16 %v436
    %v877 = vunpack.c.l.b16 %v437
    %v878 = vunpack.c.h.b16 %v437
    %v879 = vunpack.c.l.b16 %v438
    %v880 = vunpack.c.h.b16 %v438
    %v881 = vunpack.c.l.b16 %v439
    %v882 = vunpack.c.h.b16 %v439
    %v883 = vunpack.c.l.b16 %v440
    %v884 = vunpack.c.h.b16 %v440
    %v885 = vunpack.c.l.b16 %v441
    %v886 = vunpack.c.h.b16 %v441
    %v887 = vunpack.c.l.b16 %v442
    %v888 = vpack.c.b16 %v701, %v684
    %v889 = vpack.c.b16 %v702, %v685
    %v890 = vpack.c.b16 %v703, %v686
    %v891 = vpack.c.b16 %v704, %v687
    %v892 = vpack.c.b16 %v705, %v688
    %v893 = vpack.c.b16 %v706, %v689
    %v894 = vpack.c.b16 %v707, %v690
    %v895 = vpack.c.b16 %v708, %v691
    %v896 = vpack.c.b16 %v709, %v692
    %v897 = vpack.c.b16 %v710, %v693
    %v898 = vpack.c.b16 %v711, %v694
    %v899 = vpack.c.b16 %v712, %v695
    %v900 = vpack.c.b16 %v713, %v696
    %v901 = vpack.c.b16 %v714, %v697
    %v902 = vpack.c.b16 %v715, %v698
    %v903 = vpack.c.b16 %v716, %v699
    %v904 = vpack.c.b16 %v717, %v700
    %v905 = vpack.c.b16 %v735, %v718
    %v906 = vpack.c.b16 %v736, %v719
    %v907 = vpack.c.b16 %v737, %v720
    %v908 = vpack.c.b16 %v738, %v721
    %v909 = vpack.c.b16 %v739, %v722
    %v910 = vpack.c.b16 %v740, %v723
    %v911 = vpack.c.b16 %v741, %v724
    %v912 = vpack.c.b16 %v742, %v725
    %v913 = vpack.c.b16 %v743, %v726
    %v914 = vpack.c.b16 %v744, %v727
    %v915 = vpack.c.b16 %v745, %v728
    %v916 = vpack.c.b16 %v746, %v729
    %v917 = vpack.c.b16 %v747, %v730
    %v918 = vpack.c.b16 %v748, %v731
    %v919 = vpack.c.b16 %v749, %v732
    %v920 = vpack.c.b16 %v750, %v733
    %v921 = vpack.c.b16 %v751, %v734
    %v922 = vpack.c.b16 %v769, %v752
    %v923 = vpack.c.b16 %v770, %v753
    %v924 = vpack.c.b16 %v771, %v754
    %v925 = vpack.c.b16 %v772, %v755
    %v926 = vpack.c.b16 %v773, %v756
    %v927 = vpack.c.b16 %v774, %v757
    %v928 = vpack.c.b16 %v775, %v758
    %v929 = vpack.c.b16 %v776, %v759
    %v930 = vpack.c.b16 %v777, %v760
    %v931 = vpack.c.b16 %v778, %v761
    %v932 = vpack.c.b16 %v779, %v762
    %v933 = vpack.c.b16 %v780, %v763
    %v934 = vpack.c.b16 %v781, %v764
    %v935 = vpack.c.b16 %v782, %v765
    %v936 = vpack.c.b16 %v783, %v766
    %v937 = vpack.c.b16 %v784, %v767
    %v938 = vpack.c.b16 %v785, %v768
    %v939 = vpack.c.b16 %v803, %v786
    %v940 = vpack.c.b16 %v804, %v787
    %v941 = vpack.c.b16 %v805, %v788
    %v942 = vpack.c.b16 %v806, %v789
    %v943 = vpack.c.b16 %v807, %v790
    %v944 = vpack.c.b16 %v808, %v791
    %v945 = vpack.c.b16 %v809, %v792
    %v946 = vpack.c.b16 %v810, %v793
    %v947 = vpack.c.b16 %v811, %v794
    %v948 = vpack.c.b16 %v812, %v795
    %v949 = vpack.c.b16 %v813, %v796
    %v950 = vpack.c.b16 %v814, %v797
    %v951 = vpack.c.b16 %v815, %v798
    %v952 = vpack.c.b16 %v816, %v799
    %v953 = vpack.c.b16 %v817, %v800
    %v954 = vpack.c.b16 %v818, %v801
    %v955 = vpack.c.b16 %v819, %v802
    %v956 = vpack.c.b16 %v837, %v820
    %v957 = vpack.c.b16 %v838, %v821
    %v958 = vpack.c.b16 %v839, %v822
    %v959 = vpack.c.b16 %v840, %v823
    %v960 = vpack.c.b16 %v841, %v824
    %v961 = vpack.c.b16 %v842, %v825
    %v962 = vpack.c.b16 %v843, %v826
    %v963 = vpack.c.b16 %v844, %v827
    %v964 = vpack.c.b16 %v845, %v828
    %v965 = vpack.c.b16 %v846, %v829
    %v966 = vpack.c.b16 %v847, %v830
    %v967 = vpack.c.b16 %v848, %v831
    %v968 = vpack.c.b16 %v849, %v832
    %v969 = vpack.c.b16 %v850, %v833
    %v970 = vpack.c.b16 %v851, %v834
    %v971 = vpack.c.b16 %v852, %v835
    %v972 = vpack.c.b16 %v853, %v836
    %v973 = vpack.c.b16 %v871, %v854
    %v974 = vpack.c.b16 %v872, %v855
    %v975 = vpack.c.b16 %v873, %v856
    %v976 = vpack.c.b16 %v874, %v857
    %v977 = vpack.c.b16 %v875, %v858
    %v978 = vpack.c.b16 %v876, %v859
    %v979 = vpack.c.b16 %v877, %v860
    %v980 = vpack.c.b16 %v878, %v861
    %v981 = vpack.c.b16 %v879, %v862
    %v982 = vpack.c.b16 %v880, %v863
    %v983 = vpack.c.b16 %v881, %v864
    %v984 = vpack.c.b16 %v882, %v865
    %v985 = vpack.c.b16 %v883, %v866
    %v986 = vpack.c.b16 %v884, %v867
    %v987 = vpack.c.b16 %v885, %v868
    %v988 = vpack.c.b16 %v886, %v869
    %v989 = vpack.c.b16 %v887, %v870
    %1092 = vmatprep.subr.bf16.mxu0 0
    %1093 = vmatpush1.bf16.xpose.msra.mxu0 0
    %1094 = vmatprep.subr.bf16.mxu0 0
    %1095 = vmatpush1.bf16.xpose.msra.mxu0 0
    %1096 = vmatprep.subr.bf16.mxu0 %v974
    %1097 = vmatpush1.bf16.xpose.msra.mxu0 %v973
    %1098 = vmatprep.subr.bf16.mxu0 %v957
    %1099 = vmatpush1.bf16.xpose.msra.mxu0 %v956
    %1100 = vmatprep.subr.bf16.mxu0 %v940
    %1101 = vmatpush1.bf16.xpose.msra.mxu0 %v939
    %1102 = vmatprep.subr.bf16.mxu0 %v923
    %1103 = vmatpush1.bf16.xpose.msra.mxu0 %v922
    %1104 = vmatprep.subr.bf16.mxu0 %v906
    %1105 = vmatpush1.bf16.xpose.msra.mxu0 %v905
    %1106 = vmatprep.subr.bf16.mxu0 %v889
    %1107 = vmatpush1.bf16.xpose.msra.mxu0 %v888
    %1108 = vmatprep.subr.bf16.mxu0 0
    %1109 = vmatpush2.bf16.xpose.msra.mxu0 0
    %1110 = vmatprep.subr.bf16.mxu0 0
    %1111 = vmatpush2.bf16.xpose.msra.mxu0 0
    %1112 = vmatprep.subr.bf16.mxu0 0
    %1113 = vmatpush2.bf16.xpose.msra.mxu0 0
    %1114 = vmatprep.subr.bf16.mxu0 0
    %1115 = vmatpush2.bf16.xpose.msra.mxu0 0
    %1116 = vmatprep.subr.bf16.mxu0 0
    %1117 = vmatpush2.bf16.xpose.msra.mxu0 0
    %1118 = vmatprep.subr.bf16.mxu0 0
    %1119 = vmatpush2.bf16.xpose.msra.mxu0 0
    %1120 = vmatprep.subr.bf16.mxu0 0
    %1121 = vmatpush2.bf16.xpose.msra.mxu0 0
    %1122 = vmatprep.subr.bf16.mxu0 0
    %1123 = vmatpush2.bf16.xpose.msra.mxu0 0
    %1124 = vmatprep.mubr.bf16.mxu0 %v484
    %1125 = vmatmul.mubr.bf16.gmra.mxu0 %v470
    %v1126 = vpop.f32.mrf.mxu0
    %v1127 = vadd.f32 %v443, %v1126
    %v1128 = vpop.f32.mrf.mxu0
    %v1129 = vpop.f32.mrf.mxu0
    %v1130 = vpop.f32.mrf.mxu0
    %1131 = vdwg.mxu0
    %1132 = vmatprep.subr.bf16.mxu0 0
    %1133 = vmatpush1.bf16.xpose.msra.mxu0 0
    %1134 = vmatprep.subr.bf16.mxu0 0
    %1135 = vmatpush1.bf16.xpose.msra.mxu0 0
    %1136 = vmatprep.subr.bf16.mxu0 %v976
    %1137 = vmatpush1.bf16.xpose.msra.mxu0 %v975
    %1138 = vmatprep.subr.bf16.mxu0 %v959
    %1139 = vmatpush1.bf16.xpose.msra.mxu0 %v958
    %1140 = vmatprep.subr.bf16.mxu0 %v942
    %1141 = vmatpush1.bf16.xpose.msra.mxu0 %v941
    %1142 = vmatprep.subr.bf16.mxu0 %v925
    %1143 = vmatpush1.bf16.xpose.msra.mxu0 %v924
    %1144 = vmatprep.subr.bf16.mxu0 %v908
    %1145 = vmatpush1.bf16.xpose.msra.mxu0 %v907
    %1146 = vmatprep.subr.bf16.mxu0 %v891
    %1147 = vmatpush1.bf16.xpose.msra.mxu0 %v890
    %1148 = vmatprep.subr.bf16.mxu0 0
    %1149 = vmatpush2.bf16.xpose.msra.mxu0 0
    %1150 = vmatprep.subr.bf16.mxu0 0
    %1151 = vmatpush2.bf16.xpose.msra.mxu0 0
    %1152 = vmatprep.subr.bf16.mxu0 0
    %1153 = vmatpush2.bf16.xpose.msra.mxu0 0
    %1154 = vmatprep.subr.bf16.mxu0 0
    %1155 = vmatpush2.bf16.xpose.msra.mxu0 0
    %1156 = vmatprep.subr.bf16.mxu0 0
    %1157 = vmatpush2.bf16.xpose.msra.mxu0 0
    %1158 = vmatprep.subr.bf16.mxu0 0
    %1159 = vmatpush2.bf16.xpose.msra.mxu0 0
    %1160 = vmatprep.subr.bf16.mxu0 0
    %1161 = vmatpush2.bf16.xpose.msra.mxu0 0
    %1162 = vmatprep.subr.bf16.mxu0 0
    %1163 = vmatpush2.bf16.xpose.msra.mxu0 0
    %1164 = vmatprep.mubr.bf16.mxu0 %v494
    %1165 = vmatmul.mubr.bf16.gmra.mxu0 %v492
    %v1166 = vpop.f32.mrf.mxu0
    %v1167 = vadd.f32 %v1127, %v1166
    %v1168 = vpop.f32.mrf.mxu0
    %v1169 = vpop.f32.mrf.mxu0
    %v1170 = vpop.f32.mrf.mxu0
    %1171 = vdwg.mxu0
    %1172 = vmatprep.subr.bf16.mxu0 0
    %1173 = vmatpush1.bf16.xpose.msra.mxu0 0
    %1174 = vmatprep.subr.bf16.mxu0 0
    %1175 = vmatpush1.bf16.xpose.msra.mxu0 0
    %1176 = vmatprep.subr.bf16.mxu0 %v978
    %1177 = vmatpush1.bf16.xpose.msra.mxu0 %v977
    %1178 = vmatprep.subr.bf16.mxu0 %v961
    %1179 = vmatpush1.bf16.xpose.msra.mxu0 %v960
    %1180 = vmatprep.subr.bf16.mxu0 %v944
    %1181 = vmatpush1.bf16.xpose.msra.mxu0 %v943
    %1182 = vmatprep.subr.bf16.mxu0 %v927
    %1183 = vmatpush1.bf16.xpose.msra.mxu0 %v926
    %1184 = vmatprep.subr.bf16.mxu0 %v910
    %1185 = vmatpush1.bf16.xpose.msra.mxu0 %v909
    %1186 = vmatprep.subr.bf16.mxu0 %v893
    %1187 = vmatpush1.bf16.xpose.msra.mxu0 %v892
    %1188 = vmatprep.subr.bf16.mxu0 0
    %1189 = vmatpush2.bf16.xpose.msra.mxu0 0
    %1190 = vmatprep.subr.bf16.mxu0 0
    %1191 = vmatpush2.bf16.xpose.msra.mxu0 0
    %1192 = vmatprep.subr.bf16.mxu0 0
    %1193 = vmatpush2.bf16.xpose.msra.mxu0 0
    %1194 = vmatprep.subr.bf16.mxu0 0
    %1195 = vmatpush2.bf16.xpose.msra.mxu0 0
    %1196 = vmatprep.subr.bf16.mxu0 0
    %1197 = vmatpush2.bf16.xpose.msra.mxu0 0
    %1198 = vmatprep.subr.bf16.mxu0 0
    %1199 = vmatpush2.bf16.xpose.msra.mxu0 0
    %1200 = vmatprep.subr.bf16.mxu0 0
    %1201 = vmatpush2.bf16.xpose.msra.mxu0 0
    %1202 = vmatprep.subr.bf16.mxu0 0
    %1203 = vmatpush2.bf16.xpose.msra.mxu0 0
    %1204 = vmatprep.mubr.bf16.mxu0 %v491
    %1205 = vmatmul.mubr.bf16.gmra.mxu0 %v477
    %v1206 = vpop.f32.mrf.mxu0
    %v1207 = vadd.f32 %v1167, %v1206
    %v1208 = vpop.f32.mrf.mxu0
    %v1209 = vpop.f32.mrf.mxu0
    %v1210 = vpop.f32.mrf.mxu0
    %1211 = vdwg.mxu0
    %1212 = vmatprep.subr.bf16.mxu0 0
    %1213 = vmatpush1.bf16.xpose.msra.mxu0 0
    %1214 = vmatprep.subr.bf16.mxu0 0
    %1215 = vmatpush1.bf16.xpose.msra.mxu0 0
    %1216 = vmatprep.subr.bf16.mxu0 %v980
    %1217 = vmatpush1.bf16.xpose.msra.mxu0 %v979
    %1218 = vmatprep.subr.bf16.mxu0 %v963
    %1219 = vmatpush1.bf16.xpose.msra.mxu0 %v962
    %1220 = vmatprep.subr.bf16.mxu0 %v946
    %1221 = vmatpush1.bf16.xpose.msra.mxu0 %v945
    %1222 = vmatprep.subr.bf16.mxu0 %v929
    %1223 = vmatpush1.bf16.xpose.msra.mxu0 %v928
    %1224 = vmatprep.subr.bf16.mxu0 %v912
    %1225 = vmatpush1.bf16.xpose.msra.mxu0 %v911
    %1226 = vmatprep.subr.bf16.mxu0 %v895
    %1227 = vmatpush1.bf16.xpose.msra.mxu0 %v894
    %1228 = vmatprep.subr.bf16.mxu0 0
    %1229 = vmatpush2.bf16.xpose.msra.mxu0 0
    %1230 = vmatprep.subr.bf16.mxu0 0
    %1231 = vmatpush2.bf16.xpose.msra.mxu0 0
    %1232 = vmatprep.subr.bf16.mxu0 0
    %1233 = vmatpush2.bf16.xpose.msra.mxu0 0
    %1234 = vmatprep.subr.bf16.mxu0 0
    %1235 = vmatpush2.bf16.xpose.msra.mxu0 0
    %1236 = vmatprep.subr.bf16.mxu0 0
    %1237 = vmatpush2.bf16.xpose.msra.mxu0 0
    %1238 = vmatprep.subr.bf16.mxu0 0
    %1239 = vmatpush2.bf16.xpose.msra.mxu0 0
    %1240 = vmatprep.subr.bf16.mxu0 0
    %1241 = vmatpush2.bf16.xpose.msra.mxu0 0
    %1242 = vmatprep.subr.bf16.mxu0 0
    %1243 = vmatpush2.bf16.xpose.msra.mxu0 0
    %1244 = vmatprep.mubr.bf16.mxu0 %v495
    %1245 = vmatmul.mubr.bf16.gmra.mxu0 %v493
    %v1246 = vpop.f32.mrf.mxu0
    %v1247 = vadd.f32 %v1207, %v1246
    %v1248 = vpop.f32.mrf.mxu0
    %v1249 = vpop.f32.mrf.mxu0
    %v1250 = vpop.f32.mrf.mxu0
    %1251 = vdwg.mxu0
    %1252 = vmatprep.subr.bf16.mxu0 0
    %1253 = vmatpush1.bf16.xpose.msra.mxu0 0
    %1254 = vmatprep.subr.bf16.mxu0 0
    %1255 = vmatpush1.bf16.xpose.msra.mxu0 0
    %1256 = vmatprep.subr.bf16.mxu0 %v982
    %1257 = vmatpush1.bf16.xpose.msra.mxu0 %v981
    %1258 = vmatprep.subr.bf16.mxu0 %v965
    %1259 = vmatpush1.bf16.xpose.msra.mxu0 %v964
    %1260 = vmatprep.subr.bf16.mxu0 %v948
    %1261 = vmatpush1.bf16.xpose.msra.mxu0 %v947
    %1262 = vmatprep.subr.bf16.mxu0 %v931
    %1263 = vmatpush1.bf16.xpose.msra.mxu0 %v930
    %1264 = vmatprep.subr.bf16.mxu0 %v914
    %1265 = vmatpush1.bf16.xpose.msra.mxu0 %v913
    %1266 = vmatprep.subr.bf16.mxu0 %v897
    %1267 = vmatpush1.bf16.xpose.msra.mxu0 %v896
    %1268 = vmatprep.subr.bf16.mxu0 0
    %1269 = vmatpush2.bf16.xpose.msra.mxu0 0
    %1270 = vmatprep.subr.bf16.mxu0 0
    %1271 = vmatpush2.bf16.xpose.msra.mxu0 0
    %1272 = vmatprep.subr.bf16.mxu0 0
    %1273 = vmatpush2.bf16.xpose.msra.mxu0 0
    %1274 = vmatprep.subr.bf16.mxu0 0
    %1275 = vmatpush2.bf16.xpose.msra.mxu0 0
    %1276 = vmatprep.subr.bf16.mxu0 0
    %1277 = vmatpush2.bf16.xpose.msra.mxu0 0
    %1278 = vmatprep.subr.bf16.mxu0 0
    %1279 = vmatpush2.bf16.xpose.msra.mxu0 0
    %1280 = vmatprep.subr.bf16.mxu0 0
    %1281 = vmatpush2.bf16.xpose.msra.mxu0 0
    %1282 = vmatprep.subr.bf16.mxu0 0
    %1283 = vmatpush2.bf16.xpose.msra.mxu0 0
    %1284 = vmatprep.mubr.bf16.mxu0 %v533
    %1285 = vmatmul.mubr.bf16.gmra.mxu0 %v519
    %v1286 = vpop.f32.mrf.mxu0
    %v1287 = vadd.f32 %v1247, %v1286
    %v1288 = vpop.f32.mrf.mxu0
    %v1289 = vpop.f32.mrf.mxu0
    %v1290 = vpop.f32.mrf.mxu0
    %1291 = vdwg.mxu0
    %1292 = vmatprep.subr.bf16.mxu0 0
    %1293 = vmatpush1.bf16.xpose.msra.mxu0 0
    %1294 = vmatprep.subr.bf16.mxu0 0
    %1295 = vmatpush1.bf16.xpose.msra.mxu0 0
    %1296 = vmatprep.subr.bf16.mxu0 %v984
    %1297 = vmatpush1.bf16.xpose.msra.mxu0 %v983
    %1298 = vmatprep.subr.bf16.mxu0 %v967
    %1299 = vmatpush1.bf16.xpose.msra.mxu0 %v966
    %1300 = vmatprep.subr.bf16.mxu0 %v950
    %1301 = vmatpush1.bf16.xpose.msra.mxu0 %v949
    %1302 = vmatprep.subr.bf16.mxu0 %v933
    %1303 = vmatpush1.bf16.xpose.msra.mxu0 %v932
    %1304 = vmatprep.subr.bf16.mxu0 %v916
    %1305 = vmatpush1.bf16.xpose.msra.mxu0 %v915
    %1306 = vmatprep.subr.bf16.mxu0 %v899
    %1307 = vmatpush1.bf16.xpose.msra.mxu0 %v898
    %1308 = vmatprep.subr.bf16.mxu0 0
    %1309 = vmatpush2.bf16.xpose.msra.mxu0 0
    %1310 = vmatprep.subr.bf16.mxu0 0
    %1311 = vmatpush2.bf16.xpose.msra.mxu0 0
    %1312 = vmatprep.subr.bf16.mxu0 0
    %1313 = vmatpush2.bf16.xpose.msra.mxu0 0
    %1314 = vmatprep.subr.bf16.mxu0 0
    %1315 = vmatpush2.bf16.xpose.msra.mxu0 0
    %1316 = vmatprep.subr.bf16.mxu0 0
    %1317 = vmatpush2.bf16.xpose.msra.mxu0 0
    %1318 = vmatprep.subr.bf16.mxu0 0
    %1319 = vmatpush2.bf16.xpose.msra.mxu0 0
    %1320 = vmatprep.subr.bf16.mxu0 0
    %1321 = vmatpush2.bf16.xpose.msra.mxu0 0
    %1322 = vmatprep.subr.bf16.mxu0 0
    %1323 = vmatpush2.bf16.xpose.msra.mxu0 0
    %1324 = vmatprep.mubr.bf16.mxu0 %v543
    %1325 = vmatmul.mubr.bf16.gmra.mxu0 %v541
    %v1326 = vpop.f32.mrf.mxu0
    %v1327 = vadd.f32 %v1287, %v1326
    %v1328 = vpop.f32.mrf.mxu0
    %v1329 = vpop.f32.mrf.mxu0
    %v1330 = vpop.f32.mrf.mxu0
    %1331 = vdwg.mxu0
    %1332 = vmatprep.subr.bf16.mxu0 0
    %1333 = vmatpush1.bf16.xpose.msra.mxu0 0
    %1334 = vmatprep.subr.bf16.mxu0 0
    %1335 = vmatpush1.bf16.xpose.msra.mxu0 0
    %1336 = vmatprep.subr.bf16.mxu0 %v986
    %1337 = vmatpush1.bf16.xpose.msra.mxu0 %v985
    %1338 = vmatprep.subr.bf16.mxu0 %v969
    %1339 = vmatpush1.bf16.xpose.msra.mxu0 %v968
    %1340 = vmatprep.subr.bf16.mxu0 %v952
    %1341 = vmatpush1.bf16.xpose.msra.mxu0 %v951
    %1342 = vmatprep.subr.bf16.mxu0 %v935
    %1343 = vmatpush1.bf16.xpose.msra.mxu0 %v934
    %1344 = vmatprep.subr.bf16.mxu0 %v918
    %1345 = vmatpush1.bf16.xpose.msra.mxu0 %v917
    %1346 = vmatprep.subr.bf16.mxu0 %v901
    %1347 = vmatpush1.bf16.xpose.msra.mxu0 %v900
    %1348 = vmatprep.subr.bf16.mxu0 0
    %1349 = vmatpush2.bf16.xpose.msra.mxu0 0
    %1350 = vmatprep.subr.bf16.mxu0 0
    %1351 = vmatpush2.bf16.xpose.msra.mxu0 0
    %1352 = vmatprep.subr.bf16.mxu0 0
    %1353 = vmatpush2.bf16.xpose.msra.mxu0 0
    %1354 = vmatprep.subr.bf16.mxu0 0
    %1355 = vmatpush2.bf16.xpose.msra.mxu0 0
    %1356 = vmatprep.subr.bf16.mxu0 0
    %1357 = vmatpush2.bf16.xpose.msra.mxu0 0
    %1358 = vmatprep.subr.bf16.mxu0 0
    %1359 = vmatpush2.bf16.xpose.msra.mxu0 0
    %1360 = vmatprep.subr.bf16.mxu0 0
    %1361 = vmatpush2.bf16.xpose.msra.mxu0 0
    %1362 = vmatprep.subr.bf16.mxu0 0
    %1363 = vmatpush2.bf16.xpose.msra.mxu0 0
    %1364 = vmatprep.mubr.bf16.mxu0 %v540
    %1365 = vmatmul.mubr.bf16.gmra.mxu0 %v526
    %v1366 = vpop.f32.mrf.mxu0
    %v1367 = vadd.f32 %v1327, %v1366
    %v1368 = vpop.f32.mrf.mxu0
    %v1369 = vpop.f32.mrf.mxu0
    %v1370 = vpop.f32.mrf.mxu0
    %1371 = vdwg.mxu0
    %1372 = vmatprep.subr.bf16.mxu0 0
    %1373 = vmatpush1.bf16.xpose.msra.mxu0 0
    %1374 = vmatprep.subr.bf16.mxu0 0
    %1375 = vmatpush1.bf16.xpose.msra.mxu0 0
    %1376 = vmatprep.subr.bf16.mxu0 %v988
    %1377 = vmatpush1.bf16.xpose.msra.mxu0 %v987
    %1378 = vmatprep.subr.bf16.mxu0 %v971
    %1379 = vmatpush1.bf16.xpose.msra.mxu0 %v970
    %1380 = vmatprep.subr.bf16.mxu0 %v954
    %1381 = vmatpush1.bf16.xpose.msra.mxu0 %v953
    %1382 = vmatprep.subr.bf16.mxu0 %v937
    %1383 = vmatpush1.bf16.xpose.msra.mxu0 %v936
    %1384 = vmatprep.subr.bf16.mxu0 %v920
    %1385 = vmatpush1.bf16.xpose.msra.mxu0 %v919
    %1386 = vmatprep.subr.bf16.mxu0 %v903
    %1387 = vmatpush1.bf16.xpose.msra.mxu0 %v902
    %1388 = vmatprep.subr.bf16.mxu0 0
    %1389 = vmatpush2.bf16.xpose.msra.mxu0 0
    %1390 = vmatprep.subr.bf16.mxu0 0
    %1391 = vmatpush2.bf16.xpose.msra.mxu0 0
    %1392 = vmatprep.subr.bf16.mxu0 0
    %1393 = vmatpush2.bf16.xpose.msra.mxu0 0
    %1394 = vmatprep.subr.bf16.mxu0 0
    %1395 = vmatpush2.bf16.xpose.msra.mxu0 0
    %1396 = vmatprep.subr.bf16.mxu0 0
    %1397 = vmatpush2.bf16.xpose.msra.mxu0 0
    %1398 = vmatprep.subr.bf16.mxu0 0
    %1399 = vmatpush2.bf16.xpose.msra.mxu0 0
    %1400 = vmatprep.subr.bf16.mxu0 0
    %1401 = vmatpush2.bf16.xpose.msra.mxu0 0
    %1402 = vmatprep.subr.bf16.mxu0 0
    %1403 = vmatpush2.bf16.xpose.msra.mxu0 0
    %1404 = vmatprep.mubr.bf16.mxu0 %v544
    %1405 = vmatmul.mubr.bf16.gmra.mxu0 %v542
    %v1406 = vpop.f32.mrf.mxu0
    %v1407 = vadd.f32 %v1367, %v1406
    %v1408 = vpop.f32.mrf.mxu0
    %v1409 = vpop.f32.mrf.mxu0
    %v1410 = vpop.f32.mrf.mxu0
    %1411 = vdwg.mxu0
    %1412 = vmatprep.subr.bf16.mxu0 0
    %1413 = vmatpush1.bf16.xpose.msra.mxu0 0
    %1414 = vmatprep.subr.bf16.mxu0 0
    %1415 = vmatpush1.bf16.xpose.msra.mxu0 0
    %1416 = vmatprep.subr.bf16.mxu0 0
    %1417 = vmatpush1.bf16.xpose.msra.mxu0 %v989
    %1418 = vmatprep.subr.bf16.mxu0 0
    %1419 = vmatpush1.bf16.xpose.msra.mxu0 %v972
    %1420 = vmatprep.subr.bf16.mxu0 0
    %1421 = vmatpush1.bf16.xpose.msra.mxu0 %v955
    %1422 = vmatprep.subr.bf16.mxu0 0
    %1423 = vmatpush1.bf16.xpose.msra.mxu0 %v938
    %1424 = vmatprep.subr.bf16.mxu0 0
    %1425 = vmatpush1.bf16.xpose.msra.mxu0 %v921
    %1426 = vmatprep.subr.bf16.mxu0 0
    %1427 = vmatpush1.bf16.xpose.msra.mxu0 %v904
    %1428 = vmatprep.subr.bf16.mxu0 0
    %1429 = vmatpush2.bf16.xpose.msra.mxu0 0
    %1430 = vmatprep.subr.bf16.mxu0 0
    %1431 = vmatpush2.bf16.xpose.msra.mxu0 0
    %1432 = vmatprep.subr.bf16.mxu0 0
    %1433 = vmatpush2.bf16.xpose.msra.mxu0 0
    %1434 = vmatprep.subr.bf16.mxu0 0
    %1435 = vmatpush2.bf16.xpose.msra.mxu0 0
    %1436 = vmatprep.subr.bf16.mxu0 0
    %1437 = vmatpush2.bf16.xpose.msra.mxu0 0
    %1438 = vmatprep.subr.bf16.mxu0 0
    %1439 = vmatpush2.bf16.xpose.msra.mxu0 0
    %1440 = vmatprep.subr.bf16.mxu0 0
    %1441 = vmatpush2.bf16.xpose.msra.mxu0 0
    %1442 = vmatprep.subr.bf16.mxu0 0
    %1443 = vmatpush2.bf16.xpose.msra.mxu0 0
    %1444 = vmatprep.mubr.bf16.mxu0 0
    %1445 = vmatmul.mubr.bf16.gmra.mxu0 %v558
    %v1446 = vpop.f32.mrf.mxu0
    %v1447 = vadd.f32 %v1407, %v1446
    %v1448 = vpop.f32.mrf.mxu0
    %v1449 = vpop.f32.mrf.mxu0
    %v1450 = vpop.f32.mrf.mxu0
    %1451 = vdwg.mxu0
    %vm1452 = vcmask 778240
    %1453 = vst.msk [vmem:[%s3] sm:$0x1] %vm1452, %v1447
    // Predicated region
    $region22: #{conv2d_1x1.1} parent=1 // pred_check
      _
    $region23: #{conv2d_1x1.1} parent=1 // pred_check_branch
      %1455 = sbr.rel (0) target = $region25
    $region24: #{conv2d_1x1.1} parent=1 // pred_region
      _
    $region25: #{conv2d_1x1.1} parent=1 // pred_fallthru
      _
    // Predicated region
    $region26: #{conv2d_1x1.1} parent=1 // pred_check
      _
    $region27: #{conv2d_1x1.1} parent=1 // pred_check_branch
      %1457 = sbr.rel (0) target = $region29
    $region28: #{conv2d_1x1.1} parent=1 // pred_region
      _
    $region29: #{conv2d_1x1.1} parent=1 // pred_fallthru
      _
    %1458 = vsyncpa [#allocation4], 1
    %1459 = vsyncpa [#allocation6], 1

</llo_original>
